<compile_context>
chip_gen: v7x
topology: tpu7x:2x2x1
jax: 0.10.0
libtpu: 0.0.40
codegen_flags: <defaults>
</compile_context>

<pallas_src>
import jax
import jax.numpy as jnp
from jax.experimental import pallas as pl
from jax.experimental.pallas import tpu as pltpu


def _round_up(x, m):
    return (x + m - 1) // m * m


def mlp_kernel(x_ref, w1_ref, b1_ref, w2_ref, b2_ref, w3_ref, b3_ref, o_ref):
    # x_ref: (TM, K1) bf16    w1_ref: (K1, H1) bf16   b1_ref: (1, H1) f32
    # w2_ref: (H1, H2) bf16   b2_ref: (1, H2) f32
    # w3_ref: (1, H2)  f32    b3_ref: (1,)    f32 in SMEM
    h1 = jnp.dot(x_ref[...], w1_ref[...], preferred_element_type=jnp.float32)
    h1 = jnp.maximum(h1 + b1_ref[...], 0.0)

    h2 = jnp.dot(h1.astype(jnp.bfloat16), w2_ref[...],
                 preferred_element_type=jnp.float32)
    h2 = jnp.maximum(h2 + b2_ref[...], 0.0)

    # fc3 (out_dim == 1): VPU multiply + cross-lane reduce instead of a
    # degenerate N=1 MXU matmul. Scalar bias comes from SMEM.
    out = jnp.sum(h2 * w3_ref[...], axis=-1, keepdims=True) + b3_ref[0]
    o_ref[...] = out.astype(o_ref.dtype)


def mlp_pallas(x, w1, b1, w2, b2, w3, b3, *, tm_max=512):
    B, in_dim = x.shape
    H1 = w1.shape[1]
    H2 = w2.shape[1]
    out_dim = w3.shape[1]
    assert out_dim == 1, "fc3 projection implemented as a VPU reduction (out_dim == 1)"

    # Pad contraction dim of fc1 to a lane-aligned 128 multiple, and the batch
    # to a multiple of the row tile.
    K1 = _round_up(in_dim, 128)
    TM = min(tm_max, _round_up(B, 8))
    B_pad = _round_up(B, TM)

    x_p = jnp.pad(x, ((0, B_pad - B), (0, K1 - in_dim))).astype(jnp.bfloat16)
    w1_p = jnp.pad(w1, ((0, K1 - in_dim), (0, 0))).astype(jnp.bfloat16)
    w2_b = w2.astype(jnp.bfloat16)
    b1_f = b1.astype(jnp.float32)                 # (1, H1)
    b2_f = b2.astype(jnp.float32)                 # (1, H2)
    w3_row = w3.reshape(1, H2).astype(jnp.float32)  # (1, H2), kept f32 for the VPU
    b3_s = b3.reshape((1,)).astype(jnp.float32)     # scalar -> SMEM

    grid = (B_pad // TM,)

    out = pl.pallas_call(
        mlp_kernel,
        out_shape=jax.ShapeDtypeStruct((B_pad, 1), jnp.float32),
        grid_spec=pltpu.PrefetchScalarGridSpec(
            num_scalar_prefetch=0,
            grid=grid,
            in_specs=[
                pl.BlockSpec((TM, K1), lambda i: (i, 0)),       # x: streamed per tile
                pl.BlockSpec((K1, H1), lambda i: (0, 0)),       # w1: VMEM-resident
                pl.BlockSpec((1, H1), lambda i: (0, 0)),        # b1
                pl.BlockSpec((H1, H2), lambda i: (0, 0)),       # w2
                pl.BlockSpec((1, H2), lambda i: (0, 0)),        # b2
                pl.BlockSpec((1, H2), lambda i: (0, 0)),        # w3 row
                pl.BlockSpec(memory_space=pltpu.MemorySpace.SMEM),  # b3 scalar
            ],
            out_specs=pl.BlockSpec((TM, 1), lambda i: (i, 0)),
        ),
        compiler_params=pltpu.CompilerParams(
            # Batch tiles are independent -> megacore sharding on v7x.
            dimension_semantics=("parallel",),
            # Re-derive for v7x (64 MiB physical VMEM) if hidden dims are scaled up.
            vmem_limit_bytes=64 * 1024 * 1024,
        ),
    )(x_p, w1_p, b1_f, w2_b, b2_f, w3_row, b3_s)

    return out[:B]


def init_linear(key, in_dim, out_dim):
    # Deterministic init mimicking PyTorch nn.Linear default (uniform +/- 1/sqrt(in_dim)).
    kw, kb = jax.random.split(key)
    bound = 1.0 / jnp.sqrt(jnp.float32(in_dim))
    # Stored transposed: (in_dim, out_dim) so the kernel computes x @ W + b.
    w = jax.random.uniform(kw, (in_dim, out_dim), jnp.float32, -bound, bound)
    b = jax.random.uniform(kb, (1, out_dim), jnp.float32, -bound, bound)
    return w, b


def mlp_ref(x, w1, b1, w2, b2, w3, b3):
    h1 = jnp.maximum(x @ w1 + b1, 0.0)
    h2 = jnp.maximum(h1 @ w2 + b2, 0.0)
    return h2 @ w3 + b3


if __name__ == "__main__":
    in_dim, hidden1, hidden2, out_dim = 30, 128, 128, 1
    batch = 8

    key = jax.random.PRNGKey(0)
    kx, k1, k2, k3 = jax.random.split(key, 4)

    x = jax.random.normal(kx, (batch, in_dim), jnp.float32)
    w1, b1 = init_linear(k1, in_dim, hidden1)
    w2, b2 = init_linear(k2, hidden1, hidden2)
    w3, b3 = init_linear(k3, hidden2, out_dim)

    out = mlp_pallas(x, w1, b1, w2, b2, w3, b3)
    out = jax.block_until_ready(out)

    ref = mlp_ref(x, w1, b1, w2, b2, w3, b3)
    assert out.shape == (batch, out_dim)
    # Tolerance loosened vs the pure-f32 reference because the MXU operands are bf16
    # (f32 accumulation); error at these magnitudes is ~1e-2.
    assert jnp.allclose(out, ref, atol=5e-2, rtol=5e-2), "mismatch vs reference"

    print("KERNEL_OK")
</pallas_src>

<mosaic_0001>
module attributes {stable_mosaic.version = 11 : i64} {
  func.func @mlp_kernel(%arg0: i32, %arg1: memref<8x128xbf16, #tpu.memory_space<vmem>>, %arg2: memref<128x128xbf16, #tpu.memory_space<vmem>>, %arg3: memref<1x128xf32, #tpu.memory_space<vmem>>, %arg4: memref<128x128xbf16, #tpu.memory_space<vmem>>, %arg5: memref<1x128xf32, #tpu.memory_space<vmem>>, %arg6: memref<1x128xf32, #tpu.memory_space<vmem>>, %arg7: memref<1xf32, #tpu.memory_space<smem>>, %arg8: memref<8x1xf32, #tpu.memory_space<vmem>>) attributes {dimension_semantics = [#tpu.dimension_semantics<parallel>], iteration_bounds = array<i64: 1>, scalar_prefetch = 0 : i64, scratch_operands = 0 : i64, tpu.core_type = #tpu.core_type<tc>, window_params = [{transform_indices = @transform_0, window_bounds = array<i64: 8, 128>}, {pipeline_mode = #tpu.pipeline_mode<synchronous>, transform_indices = @transform_1, window_bounds = array<i64: 128, 128>}, {pipeline_mode = #tpu.pipeline_mode<synchronous>, transform_indices = @transform_2, window_bounds = array<i64: 1, 128>}, {pipeline_mode = #tpu.pipeline_mode<synchronous>, transform_indices = @transform_3, window_bounds = array<i64: 128, 128>}, {pipeline_mode = #tpu.pipeline_mode<synchronous>, transform_indices = @transform_4, window_bounds = array<i64: 1, 128>}, {pipeline_mode = #tpu.pipeline_mode<synchronous>, transform_indices = @transform_5, window_bounds = array<i64: 1, 128>}, {transform_indices = @transform_6, window_bounds = array<i64: 1>}, {transform_indices = @transform_7, window_bounds = array<i64: 8, 1>}]} {
    %c0 = arith.constant 0 : index
    %c0_0 = arith.constant 0 : index
    %0 = vector.load %arg1[%c0, %c0_0] : memref<8x128xbf16, #tpu.memory_space<vmem>>, vector<8x128xbf16>
    %c0_1 = arith.constant 0 : index
    %c0_2 = arith.constant 0 : index
    %1 = vector.load %arg2[%c0_1, %c0_2] : memref<128x128xbf16, #tpu.memory_space<vmem>>, vector<128x128xbf16>
    %cst = arith.constant dense<0.000000e+00> : vector<8x128xf32>
    %2 = tpu.matmul %0, %1, %cst {dimension_numbers = #tpu.dot_dimension_numbers<[1], [0], [0], [1], [0, 0, 1, 1], [], []>} : vector<8x128xbf16>, vector<128x128xbf16>, vector<8x128xf32> -> vector<8x128xf32>
    %c0_3 = arith.constant 0 : index
    %c0_4 = arith.constant 0 : index
    %3 = vector.load %arg3[%c0_3, %c0_4] : memref<1x128xf32, #tpu.memory_space<vmem>>, vector<1x128xf32>
    %4 = vector.broadcast %3 : vector<1x128xf32> to vector<8x128xf32>
    %5 = arith.addf %2, %4 : vector<8x128xf32>
    %cst_5 = arith.constant 0.000000e+00 : f32
    %6 = vector.broadcast %cst_5 : f32 to vector<8x128xf32>
    %7 = arith.maximumf %5, %6 : vector<8x128xf32>
    %8 = arith.truncf %7 : vector<8x128xf32> to vector<8x128xbf16>
    %c0_6 = arith.constant 0 : index
    %c0_7 = arith.constant 0 : index
    %9 = vector.load %arg4[%c0_6, %c0_7] : memref<128x128xbf16, #tpu.memory_space<vmem>>, vector<128x128xbf16>
    %cst_8 = arith.constant dense<0.000000e+00> : vector<8x128xf32>
    %10 = tpu.matmul %8, %9, %cst_8 {dimension_numbers = #tpu.dot_dimension_numbers<[1], [0], [0], [1], [0, 0, 1, 1], [], []>} : vector<8x128xbf16>, vector<128x128xbf16>, vector<8x128xf32> -> vector<8x128xf32>
    %c0_9 = arith.constant 0 : index
    %c0_10 = arith.constant 0 : index
    %11 = vector.load %arg5[%c0_9, %c0_10] : memref<1x128xf32, #tpu.memory_space<vmem>>, vector<1x128xf32>
    %12 = vector.broadcast %11 : vector<1x128xf32> to vector<8x128xf32>
    %13 = arith.addf %10, %12 : vector<8x128xf32>
    %cst_11 = arith.constant 0.000000e+00 : f32
    %14 = vector.broadcast %cst_11 : f32 to vector<8x128xf32>
    %15 = arith.maximumf %13, %14 : vector<8x128xf32>
    %c0_12 = arith.constant 0 : index
    %c0_13 = arith.constant 0 : index
    %16 = vector.load %arg6[%c0_12, %c0_13] : memref<1x128xf32, #tpu.memory_space<vmem>>, vector<1x128xf32>
    %17 = vector.broadcast %16 : vector<1x128xf32> to vector<8x128xf32>
    %18 = arith.mulf %15, %17 : vector<8x128xf32>
    %cst_14 = arith.constant dense<0.000000e+00> : vector<8xf32>
    %19 = vector.multi_reduction <add>, %18, %cst_14 [1] : vector<8x128xf32> to vector<8xf32>
    %20 = vector.shape_cast %19 : vector<8xf32> to vector<8x1xf32>
    %c0_15 = arith.constant 0 : index
    %21 = memref.load %arg7[%c0_15] : memref<1xf32, #tpu.memory_space<smem>>
    %22 = vector.broadcast %21 : f32 to vector<8x1xf32>
    %23 = arith.addf %20, %22 : vector<8x1xf32>
    %c0_16 = arith.constant 0 : index
    %c0_17 = arith.constant 0 : index
    %24 = vector.load %arg8[%c0_16, %c0_17] : memref<8x1xf32, #tpu.memory_space<vmem>>, vector<8x1xf32>
    tpu.vector_store %arg8[%c0_16, %c0_17], %23 {strides = array<i32>} : memref<8x1xf32, #tpu.memory_space<vmem>>, vector<8x1xf32>,
    return
  }
  func.func @transform_0(%arg0: i32) -> (i32, i32) {
    %c0_i32 = arith.constant 0 : i32
    %c0_i32_0 = arith.constant 0 : i32
    return %arg0, %c0_i32 : i32, i32
  }
  func.func @transform_1(%arg0: i32) -> (i32, i32) {
    %c0_i32 = arith.constant 0 : i32
    %c0_i32_0 = arith.constant 0 : i32
    %c0_i32_1 = arith.constant 0 : i32
    return %c0_i32, %c0_i32_0 : i32, i32
  }
  func.func @transform_2(%arg0: i32) -> (i32, i32) {
    %c0_i32 = arith.constant 0 : i32
    %c0_i32_0 = arith.constant 0 : i32
    %c0_i32_1 = arith.constant 0 : i32
    return %c0_i32, %c0_i32_0 : i32, i32
  }
  func.func @transform_3(%arg0: i32) -> (i32, i32) {
    %c0_i32 = arith.constant 0 : i32
    %c0_i32_0 = arith.constant 0 : i32
    %c0_i32_1 = arith.constant 0 : i32
    return %c0_i32, %c0_i32_0 : i32, i32
  }
  func.func @transform_4(%arg0: i32) -> (i32, i32) {
    %c0_i32 = arith.constant 0 : i32
    %c0_i32_0 = arith.constant 0 : i32
    %c0_i32_1 = arith.constant 0 : i32
    return %c0_i32, %c0_i32_0 : i32, i32
  }
  func.func @transform_5(%arg0: i32) -> (i32, i32) {
    %c0_i32 = arith.constant 0 : i32
    %c0_i32_0 = arith.constant 0 : i32
    %c0_i32_1 = arith.constant 0 : i32
    return %c0_i32, %c0_i32_0 : i32, i32
  }
  func.func @transform_6(%arg0: i32) -> i32 {
    %c0_i32 = arith.constant 0 : i32
    %c0_i32_0 = arith.constant 0 : i32
    return %c0_i32 : i32
  }
  func.func @transform_7(%arg0: i32) -> (i32, i32) {
    %c0_i32 = arith.constant 0 : i32
    %c0_i32_0 = arith.constant 0 : i32
    return %arg0, %c0_i32 : i32, i32
  }
}

</mosaic_0001>

<llo_original>
// kernel: tpu_custom_call.1
$region0: #{tpu_custom_call.1}
  #allocation0 [shape = 'u32[]', space=smem, size = 0x4, offset = 0x4, fixed_abs, tag = 'smem constant byte address 0x4 - core index']
  #allocation1 [shape = 'u32[144,128]{1,0:T(1,128)}', space=vmem, size = 0x12000, scoped, tag = 'internal scratch']
  #allocation2 [shape = 'f32[1]{0:T(128)S(6)}', space=smem, size = 0x200, scoped, tag = 'scoped memory for tpu_custom_call.1']
  %s0 = inlined_call_operand.hbm [shape: bf16[8,128], index: 0, kind: input, shape index: {}]
  %s1 = inlined_call_operand.hbm [shape: bf16[128,128], index: 1, kind: input, shape index: {}]
  %s2 = inlined_call_operand.hbm [shape: f32[1,128], index: 2, kind: input, shape index: {}]
  %s3 = inlined_call_operand.hbm [shape: bf16[128,128], index: 3, kind: input, shape index: {}]
  %s4 = inlined_call_operand.hbm [shape: f32[1,128], index: 4, kind: input, shape index: {}]
  %s5 = inlined_call_operand.hbm [shape: f32[1,128], index: 5, kind: input, shape index: {}]
  %s6 = inlined_call_operand.<no memory space> [shape: f32[1], index: 6, kind: input, shape index: {}]
  %s7 = inlined_call_operand.hbm [shape: f32[8,1], index: 7, kind: output, shape index: {}]
  %s8 = sld [smem:[#allocation0]]
  $region62: #{tpu_custom_call.1} parent=0
    _
  %s10 = ssub.s32 1, %s8
  %s11 = scalar_select 0, %s10, %s8
  %12 = sst [smem:[#allocation2]] %s6
  $region1: #{tpu_custom_call.1} parent=0
    #allocation3 [shape = 'u8[2048]{0}', space=vmem, size = 0x800, scoped, tag = 'input window, operand 0, single buffered']
    #allocation4 [shape = 's32[1]{0}', space=sflag, size = 0x4, scoped, tag = 'scoped memory for tpu_custom_call.1']
    #allocation5 [shape = 's32[1]{0}', space=sflag, size = 0x4, scoped, tag = 'scoped memory for tpu_custom_call.1']
    #allocation6 [shape = 'u8[32768]{0}', space=vmem, size = 0x8000, scoped, tag = 'input window, operand 1, single buffered']
    #allocation7 [shape = 's32[1]{0}', space=sflag, size = 0x4, scoped, tag = 'scoped memory for tpu_custom_call.1']
    #allocation8 [shape = 'u8[512]{0}', space=vmem, size = 0x400, scoped, tag = 'input window, operand 2, single buffered']
    #allocation9 [shape = 'u8[32768]{0}', space=vmem, size = 0x8000, scoped, tag = 'input window, operand 3, single buffered']
    #allocation10 [shape = 's32[1]{0}', space=sflag, size = 0x4, scoped, tag = 'scoped memory for tpu_custom_call.1']
    #allocation11 [shape = 'u8[512]{0}', space=vmem, size = 0x400, scoped, tag = 'input window, operand 4, single buffered']
    #allocation12 [shape = 'u8[512]{0}', space=vmem, size = 0x400, scoped, tag = 'input window, operand 5, single buffered']
    #allocation13 [shape = 's32[1]{0}', space=sflag, size = 0x4, scoped, tag = 'scoped memory for tpu_custom_call.1']
    #allocation14 [shape = 'u8[4096]{0}', space=vmem, size = 0x1000, scoped, tag = 'output window, operand 0, single buffered']
    %13 = vsyncpa [#allocation4], 0
    %14 = vsyncpa [#allocation7], 0
    %15 = vsyncpa [#allocation10], 0
    %16 = vsyncpa [#allocation13], 0
    %17 = vsyncpa [#allocation5], 0
    // Predicated region
    $region2: #{tpu_custom_call.1} parent=1 // pred_check
      _
    $region3: #{tpu_custom_call.1} parent=1 // pred_check_branch
      %19 = sbr.rel (0) target = $region5
    $region4: #{tpu_custom_call.1} parent=1 // pred_region
      %s21 = ssub.s32 64, 64
      %22 = vsyncadd [#allocation4], %s21
      %s24 = sshll.u32 [#allocation3], 4
      %s25 = int_to_ptr.vmem [resolvable:$true] %s24
      %27 = dma.hbm_to_vmem [thread:$0]  %s0, 64, %s25, [#allocation4]
    $region5: #{tpu_custom_call.1} parent=1 // pred_fallthru
      _
    // Predicated region
    $region6: #{tpu_custom_call.1} parent=1 // pred_check
      _
    $region7: #{tpu_custom_call.1} parent=1 // pred_check_branch
      %29 = sbr.rel (0) target = $region9
    $region8: #{tpu_custom_call.1} parent=1 // pred_region
      %s31 = ssub.s32 1024, 1024
      %32 = vsyncadd [#allocation7], %s31
      %s33 = sshll.u32 [#allocation6], 4
      %s34 = int_to_ptr.vmem [resolvable:$true] %s33
      %39 = dma.hbm_to_vmem [thread:$0]  %s1, 1024, %s34, [#allocation7], 64, 64, 4
    $region9: #{tpu_custom_call.1} parent=1 // pred_fallthru
      _
    // Predicated region
    $region10: #{tpu_custom_call.1} parent=1 // pred_check
      _
    $region11: #{tpu_custom_call.1} parent=1 // pred_check_branch
      %41 = sbr.rel (0) target = $region13
    $region12: #{tpu_custom_call.1} parent=1 // pred_region
      %s43 = ssub.s32 16, 16
      %44 = vsyncadd [#allocation7], %s43
      %s46 = sshll.u32 [#allocation8], 4
      %s47 = int_to_ptr.vmem [resolvable:$true] %s46
      %49 = dma.hbm_to_vmem [thread:$0]  %s2, 16, %s47, [#allocation7]
    $region13: #{tpu_custom_call.1} parent=1 // pred_fallthru
      _
    // Predicated region
    $region14: #{tpu_custom_call.1} parent=1 // pred_check
      _
    $region15: #{tpu_custom_call.1} parent=1 // pred_check_branch
      %51 = sbr.rel (0) target = $region17
    $region16: #{tpu_custom_call.1} parent=1 // pred_region
      %s53 = ssub.s32 1024, 1024
      %54 = vsyncadd [#allocation10], %s53
      %s55 = sshll.u32 [#allocation9], 4
      %s56 = int_to_ptr.vmem [resolvable:$true] %s55
      %61 = dma.hbm_to_vmem [thread:$0]  %s3, 1024, %s56, [#allocation10], 64, 64, 4
    $region17: #{tpu_custom_call.1} parent=1 // pred_fallthru
      _
    // Predicated region
    $region18: #{tpu_custom_call.1} parent=1 // pred_check
      _
    $region19: #{tpu_custom_call.1} parent=1 // pred_check_branch
      %63 = sbr.rel (0) target = $region21
    $region20: #{tpu_custom_call.1} parent=1 // pred_region
      %s65 = ssub.s32 16, 16
      %66 = vsyncadd [#allocation10], %s65
      %s68 = sshll.u32 [#allocation11], 4
      %s69 = int_to_ptr.vmem [resolvable:$true] %s68
      %71 = dma.hbm_to_vmem [thread:$0]  %s4, 16, %s69, [#allocation10]
    $region21: #{tpu_custom_call.1} parent=1 // pred_fallthru
      _
    // Predicated region
    $region22: #{tpu_custom_call.1} parent=1 // pred_check
      _
    $region23: #{tpu_custom_call.1} parent=1 // pred_check_branch
      %73 = sbr.rel (0) target = $region25
    $region24: #{tpu_custom_call.1} parent=1 // pred_region
      %s75 = ssub.s32 16, 16
      %76 = vsyncadd [#allocation13], %s75
      %s78 = sshll.u32 [#allocation12], 4
      %s79 = int_to_ptr.vmem [resolvable:$true] %s78
      %81 = dma.hbm_to_vmem [thread:$0]  %s5, 16, %s79, [#allocation13]
    $region25: #{tpu_custom_call.1} parent=1 // pred_fallthru
      _
    // Predicated region
    $region26: #{tpu_custom_call.1} parent=1 // pred_check
      _
    $region27: #{tpu_custom_call.1} parent=1 // pred_check_branch
      %83 = sbr.rel (0) target = $region29
    $region28: #{tpu_custom_call.1} parent=1 // pred_region
      _
    $region29: #{tpu_custom_call.1} parent=1 // pred_fallthru
      _
    // Predicated region
    $region30: #{tpu_custom_call.1} parent=1 // pred_check
      _
    $region31: #{tpu_custom_call.1} parent=1 // pred_check_branch
      %85 = sbr.rel (0) target = $region33
    $region32: #{tpu_custom_call.1} parent=1 // pred_region
      %86 = dma.done [#allocation4], 64
    $region33: #{tpu_custom_call.1} parent=1 // pred_fallthru
      _
    // Predicated region
    $region34: #{tpu_custom_call.1} parent=1 // pred_check
      _
    $region35: #{tpu_custom_call.1} parent=1 // pred_check_branch
      %88 = sbr.rel (0) target = $region37
    $region36: #{tpu_custom_call.1} parent=1 // pred_region
      %89 = dma.done [#allocation7], 1024
    $region37: #{tpu_custom_call.1} parent=1 // pred_fallthru
      _
    // Predicated region
    $region38: #{tpu_custom_call.1} parent=1 // pred_check
      _
    $region39: #{tpu_custom_call.1} parent=1 // pred_check_branch
      %91 = sbr.rel (0) target = $region41
    $region40: #{tpu_custom_call.1} parent=1 // pred_region
      %92 = dma.done [#allocation7], 16
    $region41: #{tpu_custom_call.1} parent=1 // pred_fallthru
      _
    // Predicated region
    $region42: #{tpu_custom_call.1} parent=1 // pred_check
      _
    $region43: #{tpu_custom_call.1} parent=1 // pred_check_branch
      %94 = sbr.rel (0) target = $region45
    $region44: #{tpu_custom_call.1} parent=1 // pred_region
      %95 = dma.done [#allocation10], 1024
    $region45: #{tpu_custom_call.1} parent=1 // pred_fallthru
      _
    // Predicated region
    $region46: #{tpu_custom_call.1} parent=1 // pred_check
      _
    $region47: #{tpu_custom_call.1} parent=1 // pred_check_branch
      %97 = sbr.rel (0) target = $region49
    $region48: #{tpu_custom_call.1} parent=1 // pred_region
      %98 = dma.done [#allocation10], 16
    $region49: #{tpu_custom_call.1} parent=1 // pred_fallthru
      _
    // Predicated region
    $region50: #{tpu_custom_call.1} parent=1 // pred_check
      _
    $region51: #{tpu_custom_call.1} parent=1 // pred_check_branch
      %100 = sbr.rel (0) target = $region53
    $region52: #{tpu_custom_call.1} parent=1 // pred_region
      %101 = dma.done [#allocation13], 16
    $region53: #{tpu_custom_call.1} parent=1 // pred_fallthru
      _
    %v103 = vld [vmem:[#allocation3] sm:$0xf]
    %v104 = vld [vmem:[#allocation6] sm:$0xf]
    %v105 = vld [vmem:[#allocation6 + $0x4] sm:$0xf]
    %v106 = vld [vmem:[#allocation6 + $0x8] sm:$0xf]
    %v107 = vld [vmem:[#allocation6 + $0xc] sm:$0xf]
    %v108 = vld [vmem:[#allocation6 + $0x10] sm:$0xf]
    %v109 = vld [vmem:[#allocation6 + $0x14] sm:$0xf]
    %v110 = vld [vmem:[#allocation6 + $0x18] sm:$0xf]
    %v111 = vld [vmem:[#allocation6 + $0x1c] sm:$0xf]
    %v112 = vld [vmem:[#allocation6 + $0x20] sm:$0xf]
    %v113 = vld [vmem:[#allocation6 + $0x24] sm:$0xf]
    %v114 = vld [vmem:[#allocation6 + $0x28] sm:$0xf]
    %v115 = vld [vmem:[#allocation6 + $0x2c] sm:$0xf]
    %v116 = vld [vmem:[#allocation6 + $0x30] sm:$0xf]
    %v117 = vld [vmem:[#allocation6 + $0x34] sm:$0xf]
    %v118 = vld [vmem:[#allocation6 + $0x38] sm:$0xf]
    %v119 = vld [vmem:[#allocation6 + $0x3c] sm:$0xf]
    %v120 = vld [vmem:[#allocation8] sm:$0x1]
    %v122 = vlaneseq
    %v123 = vshrl.u32 %v122, 7
    %v124 = vsub.s32 0, %v123
    %v125 = vrot.slane %v120, %v124
    %v143 = vunpack.c.l.b16 %v104
    %v144 = vunpack.c.l.b16 %v105
    %v145 = vunpack.c.l.b16 %v106
    %v146 = vunpack.c.l.b16 %v107
    %v147 = vunpack.c.l.b16 %v108
    %v148 = vunpack.c.l.b16 %v109
    %v149 = vunpack.c.l.b16 %v110
    %v150 = vunpack.c.l.b16 %v111
    %v151 = vunpack.c.l.b16 %v112
    %v152 = vunpack.c.l.b16 %v113
    %v153 = vunpack.c.l.b16 %v114
    %v154 = vunpack.c.l.b16 %v115
    %v155 = vunpack.c.l.b16 %v116
    %v156 = vunpack.c.l.b16 %v117
    %v157 = vunpack.c.l.b16 %v118
    %v158 = vunpack.c.l.b16 %v119
    %v159 = vpack.c.b16 %v144, %v143
    %v160 = vpack.c.b16 %v146, %v145
    %v161 = vpack.c.b16 %v148, %v147
    %v162 = vpack.c.b16 %v150, %v149
    %v163 = vpack.c.b16 %v152, %v151
    %v164 = vpack.c.b16 %v154, %v153
    %v165 = vpack.c.b16 %v156, %v155
    %v166 = vpack.c.b16 %v158, %v157
    %175 = vmatprep.subr.bf16.mxu0 0
    %176 = vmatpush1.bf16.msra.mxu0 %v159
    %177 = vmatprep.subr.bf16.mxu0 0
    %178 = vmatpush1.bf16.msra.mxu0 %v160
    %179 = vmatprep.subr.bf16.mxu0 0
    %180 = vmatpush1.bf16.msra.mxu0 %v161
    %181 = vmatprep.subr.bf16.mxu0 0
    %182 = vmatpush1.bf16.msra.mxu0 %v162
    %183 = vmatprep.subr.bf16.mxu0 0
    %184 = vmatpush1.bf16.msra.mxu0 %v163
    %185 = vmatprep.subr.bf16.mxu0 0
    %186 = vmatpush1.bf16.msra.mxu0 %v164
    %187 = vmatprep.subr.bf16.mxu0 0
    %188 = vmatpush1.bf16.msra.mxu0 %v165
    %189 = vmatprep.subr.bf16.mxu0 0
    %190 = vmatpush1.bf16.msra.mxu0 %v166
    %191 = vmatprep.subr.bf16.mxu0 0
    %192 = vmatpush1.bf16.msra.mxu0 0
    %193 = vmatprep.subr.bf16.mxu0 0
    %194 = vmatpush1.bf16.msra.mxu0 0
    %195 = vmatprep.subr.bf16.mxu0 0
    %196 = vmatpush1.bf16.msra.mxu0 0
    %197 = vmatprep.subr.bf16.mxu0 0
    %198 = vmatpush1.bf16.msra.mxu0 0
    %199 = vmatprep.subr.bf16.mxu0 0
    %200 = vmatpush1.bf16.msra.mxu0 0
    %201 = vmatprep.subr.bf16.mxu0 0
    %202 = vmatpush1.bf16.msra.mxu0 0
    %203 = vmatprep.subr.bf16.mxu0 0
    %204 = vmatpush1.bf16.msra.mxu0 0
    %205 = vmatprep.subr.bf16.mxu0 0
    %206 = vmatpush1.bf16.msra.mxu0 0
    %207 = vmatprep.mubr.bf16.mxu0 0
    %208 = vmatmul.mubr.bf16.gmra.mrb[0].mxu0 %v103
    %v209 = vpop.f32.mrb[0].mxu0
    %v210 = vadd.f32 %v125, %v209
    %v211 = vpop.f32.mrb[0].mxu0
    %v212 = vpop.f32.mrb[0].mxu0
    %v213 = vpop.f32.mrb[0].mxu0
    %214 = vdwg.mxu0
    %v215 = vmax.f32 %v210, 0.0
    %v216 = vpack.c.bf16 %v215, %v215
    %v217 = vld [vmem:[#allocation9] sm:$0xf]
    %v218 = vld [vmem:[#allocation9 + $0x4] sm:$0xf]
    %v219 = vld [vmem:[#allocation9 + $0x8] sm:$0xf]
    %v220 = vld [vmem:[#allocation9 + $0xc] sm:$0xf]
    %v221 = vld [vmem:[#allocation9 + $0x10] sm:$0xf]
    %v222 = vld [vmem:[#allocation9 + $0x14] sm:$0xf]
    %v223 = vld [vmem:[#allocation9 + $0x18] sm:$0xf]
    %v224 = vld [vmem:[#allocation9 + $0x1c] sm:$0xf]
    %v225 = vld [vmem:[#allocation9 + $0x20] sm:$0xf]
    %v226 = vld [vmem:[#allocation9 + $0x24] sm:$0xf]
    %v227 = vld [vmem:[#allocation9 + $0x28] sm:$0xf]
    %v228 = vld [vmem:[#allocation9 + $0x2c] sm:$0xf]
    %v229 = vld [vmem:[#allocation9 + $0x30] sm:$0xf]
    %v230 = vld [vmem:[#allocation9 + $0x34] sm:$0xf]
    %v231 = vld [vmem:[#allocation9 + $0x38] sm:$0xf]
    %v232 = vld [vmem:[#allocation9 + $0x3c] sm:$0xf]
    %v233 = vld [vmem:[#allocation11] sm:$0x1]
    %v235 = vlaneseq
    %v236 = vshrl.u32 %v235, 7
    %v237 = vsub.s32 0, %v236
    %v238 = vrot.slane %v233, %v237
    %v256 = vunpack.c.l.b16 %v217
    %v257 = vunpack.c.l.b16 %v218
    %v258 = vunpack.c.l.b16 %v219
    %v259 = vunpack.c.l.b16 %v220
    %v260 = vunpack.c.l.b16 %v221
    %v261 = vunpack.c.l.b16 %v222
    %v262 = vunpack.c.l.b16 %v223
    %v263 = vunpack.c.l.b16 %v224
    %v264 = vunpack.c.l.b16 %v225
    %v265 = vunpack.c.l.b16 %v226
    %v266 = vunpack.c.l.b16 %v227
    %v267 = vunpack.c.l.b16 %v228
    %v268 = vunpack.c.l.b16 %v229
    %v269 = vunpack.c.l.b16 %v230
    %v270 = vunpack.c.l.b16 %v231
    %v271 = vunpack.c.l.b16 %v232
    %v272 = vpack.c.b16 %v257, %v256
    %v273 = vpack.c.b16 %v259, %v258
    %v274 = vpack.c.b16 %v261, %v260
    %v275 = vpack.c.b16 %v263, %v262
    %v276 = vpack.c.b16 %v265, %v264
    %v277 = vpack.c.b16 %v267, %v266
    %v278 = vpack.c.b16 %v269, %v268
    %v279 = vpack.c.b16 %v271, %v270
    %288 = vmatprep.subr.bf16.mxu0 0
    %289 = vmatpush1.bf16.msra.mxu0 %v272
    %290 = vmatprep.subr.bf16.mxu0 0
    %291 = vmatpush1.bf16.msra.mxu0 %v273
    %292 = vmatprep.subr.bf16.mxu0 0
    %293 = vmatpush1.bf16.msra.mxu0 %v274
    %294 = vmatprep.subr.bf16.mxu0 0
    %295 = vmatpush1.bf16.msra.mxu0 %v275
    %296 = vmatprep.subr.bf16.mxu0 0
    %297 = vmatpush1.bf16.msra.mxu0 %v276
    %298 = vmatprep.subr.bf16.mxu0 0
    %299 = vmatpush1.bf16.msra.mxu0 %v277
    %300 = vmatprep.subr.bf16.mxu0 0
    %301 = vmatpush1.bf16.msra.mxu0 %v278
    %302 = vmatprep.subr.bf16.mxu0 0
    %303 = vmatpush1.bf16.msra.mxu0 %v279
    %304 = vmatprep.subr.bf16.mxu0 0
    %305 = vmatpush1.bf16.msra.mxu0 0
    %306 = vmatprep.subr.bf16.mxu0 0
    %307 = vmatpush1.bf16.msra.mxu0 0
    %308 = vmatprep.subr.bf16.mxu0 0
    %309 = vmatpush1.bf16.msra.mxu0 0
    %310 = vmatprep.subr.bf16.mxu0 0
    %311 = vmatpush1.bf16.msra.mxu0 0
    %312 = vmatprep.subr.bf16.mxu0 0
    %313 = vmatpush1.bf16.msra.mxu0 0
    %314 = vmatprep.subr.bf16.mxu0 0
    %315 = vmatpush1.bf16.msra.mxu0 0
    %316 = vmatprep.subr.bf16.mxu0 0
    %317 = vmatpush1.bf16.msra.mxu0 0
    %318 = vmatprep.subr.bf16.mxu0 0
    %319 = vmatpush1.bf16.msra.mxu0 0
    %320 = vmatprep.mubr.bf16.mxu0 0
    %321 = vmatmul.mubr.bf16.gmra.mrb[0].mxu0 %v216
    %v322 = vpop.f32.mrb[0].mxu0
    %v323 = vadd.f32 %v238, %v322
    %v324 = vpop.f32.mrb[0].mxu0
    %v325 = vpop.f32.mrb[0].mxu0
    %v326 = vpop.f32.mrb[0].mxu0
    %327 = vdwg.mxu0
    %v328 = vmax.f32 %v323, 0.0
    %v329 = vld [vmem:[#allocation12] sm:$0x1]
    %v331 = vlaneseq
    %v332 = vshrl.u32 %v331, 7
    %v333 = vsub.s32 0, %v332
    %v334 = vrot.slane %v329, %v333
    %v336 = vmul.f32 %v328, %v334
    %337 = vadd.xlane.f32.xlu0 %v336
    %v338 = vpop.xlane.xlu0 %337
    %s339 = sld [smem:[#allocation2]]
    %v340 = vstv %s339
    %v341 = vadd.f32 %v338, %v340
    %vm342 = vcmask 7168
    %343 = vst.msk [vmem:[#allocation14] sm:$0xff] %vm342, %v341
    // Predicated region
    $region54: #{tpu_custom_call.1} parent=1 // pred_check
      _
    $region55: #{tpu_custom_call.1} parent=1 // pred_check_branch
      %345 = sbr.rel (0) target = $region57
    $region56: #{tpu_custom_call.1} parent=1 // pred_region
      %s347 = ssub.s32 128, 128
      %348 = vsyncadd [#allocation5], %s347
      %s350 = sshll.u32 [#allocation14], 4
      %s351 = int_to_ptr.vmem [resolvable:$true] %s350
      %353 = dma.vmem_to_hbm [thread:$0]  %s351, 128, %s7, [#allocation5]
    $region57: #{tpu_custom_call.1} parent=1 // pred_fallthru
      _
    // Predicated region
    $region58: #{tpu_custom_call.1} parent=1 // pred_check
      _
    $region59: #{tpu_custom_call.1} parent=1 // pred_check_branch
      %355 = sbr.rel (0) target = $region61
    $region60: #{tpu_custom_call.1} parent=1 // pred_region
      %356 = dma.done [#allocation5], 128
    $region61: #{tpu_custom_call.1} parent=1 // pred_fallthru
      _
    %357 = vsyncpa [#allocation4], 1
    %358 = vsyncpa [#allocation7], 1
    %359 = vsyncpa [#allocation10], 1
    %360 = vsyncpa [#allocation13], 1
    %361 = vsyncpa [#allocation5], 1

</llo_original>
